<compile_context>
chip_gen: v7x
topology: tpu7x:2x2x1
jax: 0.10.0
libtpu: 0.0.40
codegen_flags: <defaults>
</compile_context>

<pallas_src>
import functools

import jax
import jax.numpy as jnp
from jax.experimental import pallas as pl
from jax.experimental.pallas import tpu as pltpu


def _wce_kernel(x_ref, t_ref, out_ref, *, ignore_index, hw, tile_hw):
    # x_ref: (B, C, T) logits in their ORIGINAL dtype; t_ref: (B, T) int
    # (native dtype); out_ref: (1, 8, 128) f32 per-tile partial sum
    # (scalar at [0,0,0], zeros elsewhere).
    x = x_ref[...]                                       # keep input dtype
    t = t_ref[...].astype(jnp.int32)                     # cast after DMA (255-safe for uint8)
    B, C, T = x.shape

    # Absolute column of each lane; masks the ragged tail of the last block
    # (no wrapper-side padding, so tail lanes hold garbage logits/targets).
    col = pl.program_id(0) * tile_hw + jax.lax.broadcasted_iota(jnp.int32, (1, T), 1)
    in_bounds = col < hw                                 # (1, T)

    # Fused NLL gather in the INPUT dtype: one-hot select + sum over C is
    # exact (a single nonzero per (b, col) plus zeros); cast only the result.
    t1 = jnp.where(t == ignore_index, 0, t)              # (B, T)
    cidx = jax.lax.broadcasted_iota(jnp.int32, (1, C, 1), 1)
    sel = cidx == t1[:, None, :]                         # (B, C, T)
    picked = jnp.sum(jnp.where(sel, x, jnp.zeros((), x.dtype)), axis=1)
    picked = picked.astype(jnp.float32)                  # (B, T)

    # Stable log-sum-exp over the channel axis in f32.
    xf = x.astype(jnp.float32)
    m = jnp.max(xf, axis=1, keepdims=True)               # (B, 1, T)
    sumexp = jnp.sum(jnp.exp(xf - m), axis=1)            # (B, T)
    lse = m[:, 0, :] + jnp.log(sumexp)                   # (B, T)

    nll = lse - picked                                   # (B, T)
    # Tail logits may be NaN/inf and NaN*0 != 0: mask nll explicitly.
    nll = jnp.where(in_bounds, nll, 0.0)

    # Per-pixel count of non-ignored batch entries (the odd PyTorch broadcast);
    # in_bounds folded in so garbage tail targets contribute 0.
    valid = jnp.sum(((t != ignore_index) & in_bounds).astype(jnp.float32),
                    axis=0, keepdims=True)               # (1, T)

    total = jnp.sum(nll * valid)                         # scalar partial for this tile

    # Lane-dense (8, 128) output block: partial in [0,0,0], zeros elsewhere,
    # so the grid axis stays "parallel" (independent per-tile outputs).
    row = jax.lax.broadcasted_iota(jnp.int32, (1, 8, 128), 1)
    lane = jax.lax.broadcasted_iota(jnp.int32, (1, 8, 128), 2)
    out_ref[...] = jnp.where((row == 0) & (lane == 0), total, 0.0)


def _vmem_capacity_bytes():
    # Conservative fallback is the smallest part (v7x: 64 MiB per TC).
    try:
        info = pltpu.get_tpu_info()
        cap = getattr(info, "vmem_capacity_bytes", None)
        if cap:
            return int(cap)
    except Exception:
        pass
    return 64 * 1024 * 1024


def weighted_cross_entropy_loss(output, target, weight=None, ignore_index=255,
                                max_tile_hw=None):
    """output: (B, C, H, W) float; target: (B, H, W) int (255 = ignore)."""
    B, C, H, W = output.shape
    assert B == C, "PyTorch forward's mask broadcast is only valid when B == C"
    HW = H * W

    # Contiguous reshapes only — no pad, no dtype widening (no extra HBM pass).
    x = output.reshape(B, C, HW)
    t = target.reshape(B, HW)

    # Generation-aware tile sizing: double-buffered inputs + ~6 f32 working
    # copies of the (B, C, tile) block (margin for Mosaic temporaries).
    vmem_cap = _vmem_capacity_bytes()
    if vmem_cap >= 128 * 1024 * 1024:          # v5e / v6e (128 MiB VMEM)
        budget = 56 * 1024 * 1024
        vmem_limit = 100 * 1024 * 1024
    else:                                      # v7x (64 MiB physical VMEM)
        budget = 24 * 1024 * 1024
        vmem_limit = 40 * 1024 * 1024

    bytes_per_col = (2 * (B * C * output.dtype.itemsize + B * target.dtype.itemsize)
                     + 6 * (B * C * 4))
    tile_hw = budget // bytes_per_col
    if max_tile_hw is not None:
        tile_hw = min(tile_hw, max_tile_hw)
    hw_128 = pl.cdiv(HW, 128) * 128
    tile_hw = min(tile_hw, hw_128)
    if vmem_cap < 128 * 1024 * 1024:
        # v7x: 2 TensorCores share a parallel grid axis — keep >= 2 steps.
        half = pl.cdiv(pl.cdiv(HW, 2), 128) * 128
        tile_hw = min(tile_hw, max(128, half))
    tile_hw = max(128, (tile_hw // 128) * 128)  # lane-aligned

    num_tiles = pl.cdiv(HW, tile_hw)            # ragged tail masked in-kernel

    partials = pl.pallas_call(
        functools.partial(_wce_kernel, ignore_index=ignore_index,
                          hw=HW, tile_hw=tile_hw),
        out_shape=jax.ShapeDtypeStruct((num_tiles, 8, 128), jnp.float32),
        grid=(num_tiles,),
        in_specs=[
            pl.BlockSpec((B, C, tile_hw), lambda i: (0, 0, i)),
            pl.BlockSpec((B, tile_hw), lambda i: (0, i)),
        ],
        out_specs=pl.BlockSpec((1, 8, 128), lambda i: (i, 0, 0)),
        compiler_params=pltpu.CompilerParams(
            dimension_semantics=("parallel",),  # independent per-tile partials
            vmem_limit_bytes=vmem_limit,
        ),
    )(x, t)

    # Sum of per-tile partials; normalize by the ORIGINAL B*C*H*W.
    return jnp.sum(partials) / jnp.float32(B * C * HW)


def _reference(output, target, ignore_index=255):
    # Pure-JAX mirror of the PyTorch forward (B == C case), for a sanity check.
    output = output.astype(jnp.float32)
    B, C, H, W = output.shape
    logp = jax.nn.log_softmax(output, axis=1)                          # (B, C, H, W)
    t1 = jnp.where(target == ignore_index, 0, target)                  # (B, H, W)
    nll = -jnp.take_along_axis(logp, t1[:, None, :, :].astype(jnp.int32),
                               axis=1)[:, 0]                           # (B, H, W)
    loss = 0.0
    for b in range(B):
        pred = jnp.broadcast_to(nll[b][None], (C, H, W))               # pred * mask_fill
        pred = jnp.where(target == ignore_index, 0.0, pred)            # (B,H,W) vs (C,H,W)
        loss = loss + jnp.mean(pred)
    return loss / B


if __name__ == "__main__":
    key = jax.random.PRNGKey(0)
    k1, k2, k3, k4 = jax.random.split(key, 4)

    B, C, H, W = 4, 4, 16, 20          # B == C so the PyTorch broadcast is valid
    ignore_index = 255

    output = jax.random.normal(k1, (B, C, H, W), dtype=jnp.float32)
    target = jax.random.randint(k2, (B, H, W), 0, C, dtype=jnp.int32)
    # sprinkle some ignored pixels
    ignore_mask = jax.random.uniform(k3, (B, H, W)) < 0.2
    target = jnp.where(ignore_mask, ignore_index, target)
    # `weight` exists in the PyTorch signature but is unused by its forward.
    weight = jax.random.uniform(k4, (C,), dtype=jnp.float32)

    # small max_tile_hw so the example exercises multiple tiles AND the
    # unpadded ragged tail (HW=320, tile=128 -> 3 tiles, last one 64 wide)
    loss = weighted_cross_entropy_loss(output, target, weight, ignore_index,
                                       max_tile_hw=128)
    loss = jax.block_until_ready(loss)

    ref = _reference(output, target, ignore_index)
    assert jnp.allclose(loss, ref, rtol=1e-4, atol=1e-5), (loss, ref)

    # Also check the default (single big tile, no cap) path.
    loss2 = jax.block_until_ready(
        weighted_cross_entropy_loss(output, target, weight, ignore_index))
    assert jnp.allclose(loss2, ref, rtol=1e-4, atol=1e-5), (loss2, ref)

    print("KERNEL_OK")
</pallas_src>

<mosaic_0001>
module attributes {stable_mosaic.version = 11 : i64} {
  func.func @_wce_kernel(%arg0: i32, %arg1: memref<4x4x128xf32, #tpu.memory_space<vmem>>, %arg2: memref<4x128xi32, #tpu.memory_space<vmem>>, %arg3: memref<1x8x128xf32, #tpu.memory_space<vmem>>) attributes {dimension_semantics = [#tpu.dimension_semantics<parallel>], iteration_bounds = array<i64: 3>, scalar_prefetch = 0 : i64, scratch_operands = 0 : i64, tpu.core_type = #tpu.core_type<tc>, window_params = [{transform_indices = @transform_0, window_bounds = array<i64: 4, 4, 128>}, {transform_indices = @transform_1, window_bounds = array<i64: 4, 128>}, {transform_indices = @transform_2, window_bounds = array<i64: 1, 8, 128>}]} {
    %c0 = arith.constant 0 : index
    %c0_0 = arith.constant 0 : index
    %c0_1 = arith.constant 0 : index
    %0 = vector.load %arg1[%c0, %c0_0, %c0_1] : memref<4x4x128xf32, #tpu.memory_space<vmem>>, vector<4x4x128xf32>
    %c0_2 = arith.constant 0 : index
    %c0_3 = arith.constant 0 : index
    %1 = vector.load %arg2[%c0_2, %c0_3] : memref<4x128xi32, #tpu.memory_space<vmem>>, vector<4x128xi32>
    %c128_i32 = arith.constant 128 : i32
    %2 = arith.muli %arg0, %c128_i32 : i32
    %3 = tpu.iota {dimensions = array<i32: 1>} : vector<1x128xi32>
    %4 = vector.broadcast %2 : i32 to vector<1x128xi32>
    %5 = arith.addi %4, %3 : vector<1x128xi32>
    %c320_i32 = arith.constant 320 : i32
    %6 = vector.broadcast %c320_i32 : i32 to vector<1x128xi32>
    %7 = arith.cmpi slt, %5, %6 : vector<1x128xi32>
    %c255_i32 = arith.constant 255 : i32
    %8 = vector.broadcast %c255_i32 : i32 to vector<4x128xi32>
    %9 = arith.cmpi eq, %1, %8 : vector<4x128xi32>
    %c0_i32 = arith.constant 0 : i32
    %10 = vector.broadcast %c0_i32 : i32 to vector<4x128xi32>
    %11 = arith.select %9, %10, %1 : vector<4x128xi1>, vector<4x128xi32>
    %12 = tpu.iota {dimensions = array<i32: 1>} : vector<1x4x1xi32>
    %13 = vector.shape_cast %11 : vector<4x128xi32> to vector<4x1x128xi32>
    %14 = vector.broadcast %12 : vector<1x4x1xi32> to vector<4x4x128xi32>
    %15 = vector.broadcast %13 : vector<4x1x128xi32> to vector<4x4x128xi32>
    %16 = arith.cmpi eq, %14, %15 : vector<4x4x128xi32>
    %cst = arith.constant 0.000000e+00 : f32
    %17 = vector.broadcast %cst : f32 to vector<4x4x128xf32>
    %18 = arith.select %16, %0, %17 : vector<4x4x128xi1>, vector<4x4x128xf32>
    %cst_4 = arith.constant dense<0.000000e+00> : vector<4x128xf32>
    %19 = vector.multi_reduction <add>, %18, %cst_4 [1] : vector<4x4x128xf32> to vector<4x128xf32>
    %cst_5 = arith.constant dense<0xFF800000> : vector<4x128xf32>
    %20 = vector.multi_reduction <maximumf>, %0, %cst_5 [1] : vector<4x4x128xf32> to vector<4x128xf32>
    %21 = vector.shape_cast %20 : vector<4x128xf32> to vector<4x1x128xf32>
    %22 = vector.broadcast %21 : vector<4x1x128xf32> to vector<4x4x128xf32>
    %23 = arith.subf %0, %22 : vector<4x4x128xf32>
    %24 = math.exp %23 : vector<4x4x128xf32>
    %cst_6 = arith.constant dense<0.000000e+00> : vector<4x128xf32>
    %25 = vector.multi_reduction <add>, %24, %cst_6 [1] : vector<4x4x128xf32> to vector<4x128xf32>
    %26 = vector.shape_cast %21 : vector<4x1x128xf32> to vector<4x128xf32>
    %27 = math.log %25 : vector<4x128xf32>
    %28 = arith.addf %26, %27 : vector<4x128xf32>
    %29 = arith.subf %28, %19 : vector<4x128xf32>
    %cst_7 = arith.constant 0.000000e+00 : f32
    %30 = vector.shape_cast %7 : vector<1x128xi1> to vector<1x128xi1>
    %31 = vector.broadcast %30 : vector<1x128xi1> to vector<4x128xi1>
    %32 = vector.broadcast %cst_7 : f32 to vector<4x128xf32>
    %33 = arith.select %31, %29, %32 : vector<4x128xi1>, vector<4x128xf32>
    %c255_i32_8 = arith.constant 255 : i32
    %34 = vector.broadcast %c255_i32_8 : i32 to vector<4x128xi32>
    %35 = arith.cmpi ne, %1, %34 : vector<4x128xi32>
    %36 = vector.broadcast %7 : vector<1x128xi1> to vector<4x128xi1>
    %37 = arith.andi %35, %36 : vector<4x128xi1>
    %38 = arith.extui %37 : vector<4x128xi1> to vector<4x128xi32>
    %39 = arith.sitofp %38 : vector<4x128xi32> to vector<4x128xf32>
    %cst_9 = arith.constant dense<0.000000e+00> : vector<128xf32>
    %40 = vector.multi_reduction <add>, %39, %cst_9 [0] : vector<4x128xf32> to vector<128xf32>
    %41 = vector.shape_cast %40 : vector<128xf32> to vector<1x128xf32>
    %42 = vector.broadcast %41 : vector<1x128xf32> to vector<4x128xf32>
    %43 = arith.mulf %33, %42 : vector<4x128xf32>
    %44 = vector.shape_cast %43 : vector<4x128xf32> to vector<1x4x128xf32>
    %cst_10 = arith.constant dense<0.000000e+00> : vector<1xf32>
    %45 = vector.multi_reduction <add>, %44, %cst_10 [1, 2] : vector<1x4x128xf32> to vector<1xf32>
    %46 = vector.shape_cast %45 : vector<1xf32> to vector<1x1x1xf32>
    %47 = vector.extract %46[0, 0, 0] : f32 from vector<1x1x1xf32>
    %48 = tpu.iota {dimensions = array<i32: 1>} : vector<1x8x128xi32>
    %49 = tpu.iota {dimensions = array<i32: 2>} : vector<1x8x128xi32>
    %c0_i32_11 = arith.constant 0 : i32
    %50 = vector.broadcast %c0_i32_11 : i32 to vector<1x8x128xi32>
    %51 = arith.cmpi eq, %48, %50 : vector<1x8x128xi32>
    %c0_i32_12 = arith.constant 0 : i32
    %52 = vector.broadcast %c0_i32_12 : i32 to vector<1x8x128xi32>
    %53 = arith.cmpi eq, %49, %52 : vector<1x8x128xi32>
    %54 = arith.andi %51, %53 : vector<1x8x128xi1>
    %cst_13 = arith.constant 0.000000e+00 : f32
    %55 = vector.broadcast %47 : f32 to vector<1x8x128xf32>
    %56 = vector.broadcast %cst_13 : f32 to vector<1x8x128xf32>
    %57 = arith.select %54, %55, %56 : vector<1x8x128xi1>, vector<1x8x128xf32>
    %c0_14 = arith.constant 0 : index
    %c0_15 = arith.constant 0 : index
    %c0_16 = arith.constant 0 : index
    %58 = vector.load %arg3[%c0_14, %c0_15, %c0_16] : memref<1x8x128xf32, #tpu.memory_space<vmem>>, vector<1x8x128xf32>
    tpu.vector_store %arg3[%c0_14, %c0_15, %c0_16], %57 {strides = array<i32>} : memref<1x8x128xf32, #tpu.memory_space<vmem>>, vector<1x8x128xf32>,
    return
  }
  func.func @transform_0(%arg0: i32) -> (i32, i32, i32) {
    %c0_i32 = arith.constant 0 : i32
    %c0_i32_0 = arith.constant 0 : i32
    %c0_i32_1 = arith.constant 0 : i32
    return %c0_i32, %c0_i32_0, %arg0 : i32, i32, i32
  }
  func.func @transform_1(%arg0: i32) -> (i32, i32) {
    %c0_i32 = arith.constant 0 : i32
    %c0_i32_0 = arith.constant 0 : i32
    return %c0_i32, %arg0 : i32, i32
  }
  func.func @transform_2(%arg0: i32) -> (i32, i32, i32) {
    %c0_i32 = arith.constant 0 : i32
    %c0_i32_0 = arith.constant 0 : i32
    %c0_i32_1 = arith.constant 0 : i32
    return %arg0, %c0_i32, %c0_i32_0 : i32, i32, i32
  }
}

</mosaic_0001>

<llo_original>
// kernel: tpu_custom_call.1
$region0: #{tpu_custom_call.1}
  #allocation0 [shape = 'u32[]', space=smem, size = 0x4, offset = 0x4, fixed_abs, tag = 'smem constant byte address 0x4 - core index']
  #allocation1 [shape = 'u32[144,128]{1,0:T(1,128)}', space=vmem, size = 0x12000, scoped, tag = 'internal scratch']
  %s0 = inlined_call_operand.hbm [shape: f32[4,4,320], index: 0, kind: input, shape index: {}]
  %s1 = inlined_call_operand.hbm [shape: s32[4,320], index: 1, kind: input, shape index: {}]
  %s2 = inlined_call_operand.hbm [shape: f32[3,8,128], index: 2, kind: output, shape index: {}]
  %s3 = sld [smem:[#allocation0]]
  $region49: #{tpu_custom_call.1} parent=0
    _
  %s5 = ssub.s32 1, %s3
  %s6 = scalar_select 0, %s5, %s3
  $region1: #{tpu_custom_call.1} parent=0
    #allocation2 [shape = 'u8[16384]{0}', space=vmem, size = 0x4000, scoped, tag = 'input window, operand 0']
    #allocation3 [shape = 's32[2]{0}', space=sflag, size = 0x8, scoped, tag = 'scoped memory for tpu_custom_call.1']
    #allocation4 [shape = 's32[2]{0}', space=sflag, size = 0x8, scoped, tag = 'scoped memory for tpu_custom_call.1']
    #allocation5 [shape = 'u8[4096]{0}', space=vmem, size = 0x1000, scoped, tag = 'input window, operand 1']
    #allocation6 [shape = 's32[2]{0}', space=sflag, size = 0x8, scoped, tag = 'scoped memory for tpu_custom_call.1']
    #allocation7 [shape = 'u8[8192]{0}', space=vmem, size = 0x2000, scoped, tag = 'output window, operand 0']
    %7 = vsyncpa [#allocation3], 0
    %s8 = scalar_lea.sflag [#allocation3], 1
    %9 = vsyncpa %s8, 0
    %10 = vsyncpa [#allocation6], 0
    %s11 = scalar_lea.sflag [#allocation6], 1
    %12 = vsyncpa %s11, 0
    %13 = vsyncpa [#allocation4], 0
    %s14 = scalar_lea.sflag [#allocation4], 1
    %15 = vsyncpa %s14, 0
    loop: start=0, step=1, limit=5
    $region2: #{tpu_custom_call.1} parent=1 // loop_pre_header
      _
    $region3: #{tpu_custom_call.1} parent=1 // loop_header
      %s17 = sphi 0, %s21
      %p18 = scmp.ge.s32.totalorder %s17, 5
      %s27 = sphi 0, %s29
      %s30 = sphi 0, %s27
      %s31 = sphi 0, %s30
      %s47 = sphi 0, %s31
      %s53 = sphi 0, %s55
      %s56 = sphi 0, %s53
      %s57 = sphi 0, %s56
      %s73 = sphi 0, %s57
      %s79 = sphi 0, %s81
      %s82 = sphi 0, %s79
      %s83 = sphi 0, %s82
      %s99 = sphi 0, %s83
    $region4: #{tpu_custom_call.1} parent=1 // loop_header_branch
      %20 = sbr.rel (%p18) target = $region8
    $region5: #{tpu_custom_call.1} parent=1 // loop_body
      %s22 = ssub.s32 %s17, 1
      %s23 = ssub.s32 %s17, 2
      %s24 = sadd.s32 %s17, 1
      %s25 = ssub.s32 %s17, %s24
      %p26 = scmp.eq.s32.totalorder %s25, 0
      %s28 = sadd.s32 %s27, 1
      %s29 = scalar_select %p26, %s27, %s28
      %p32 = pneg %p26
      %p33 = scmp.eq.s32.totalorder %s17, 2
      %p34 = por %p32, %p33
      %p35 = scmp.ne.s32.totalorder %s27, %s30
      %p36 = scmp.eq.s32.totalorder %s17, 0
      %p37 = por %p35, %p36
      %p38 = scmp.ne.s32.totalorder %s27, %s30
      %p39 = scmp.eq.s32.totalorder %s22, 2
      %p40 = por %p38, %p39
      %p41 = scmp.ne.s32.totalorder %s30, %s31
      %p42 = scmp.eq.s32.totalorder %s22, 0
      %p43 = por %p41, %p42
      %p44 = scmp.ne.s32.totalorder %s30, %s31
      %p45 = scmp.eq.s32.totalorder %s23, 2
      %p46 = por %p44, %p45
      %p48 = scmp.ne.s32.totalorder %s31, %s47
      %p49 = scmp.eq.s32.totalorder %s23, 0
      %p50 = por %p48, %p49
      %s51 = ssub.s32 %s17, %s24
      %p52 = scmp.eq.s32.totalorder %s51, 0
      %s54 = sadd.s32 %s53, 1
      %s55 = scalar_select %p52, %s53, %s54
      %p58 = pneg %p52
      %p59 = scmp.eq.s32.totalorder %s17, 2
      %p60 = por %p58, %p59
      %p61 = scmp.ne.s32.totalorder %s53, %s56
      %p62 = scmp.eq.s32.totalorder %s17, 0
      %p63 = por %p61, %p62
      %p64 = scmp.ne.s32.totalorder %s53, %s56
      %p65 = scmp.eq.s32.totalorder %s22, 2
      %p66 = por %p64, %p65
      %p67 = scmp.ne.s32.totalorder %s56, %s57
      %p68 = scmp.eq.s32.totalorder %s22, 0
      %p69 = por %p67, %p68
      %p70 = scmp.ne.s32.totalorder %s56, %s57
      %p71 = scmp.eq.s32.totalorder %s23, 2
      %p72 = por %p70, %p71
      %p74 = scmp.ne.s32.totalorder %s57, %s73
      %p75 = scmp.eq.s32.totalorder %s23, 0
      %p76 = por %p74, %p75
      %s77 = ssub.s32 %s17, %s24
      %p78 = scmp.eq.s32.totalorder %s77, 0
      %s80 = sadd.s32 %s79, 1
      %s81 = scalar_select %p78, %s79, %s80
      %p84 = pneg %p78
      %p85 = scmp.eq.s32.totalorder %s17, 2
      %p86 = por %p84, %p85
      %p87 = scmp.ne.s32.totalorder %s79, %s82
      %p88 = scmp.eq.s32.totalorder %s17, 0
      %p89 = por %p87, %p88
      %p90 = scmp.ne.s32.totalorder %s79, %s82
      %p91 = scmp.eq.s32.totalorder %s22, 2
      %p92 = por %p90, %p91
      %p93 = scmp.ne.s32.totalorder %s82, %s83
      %p94 = scmp.eq.s32.totalorder %s22, 0
      %p95 = por %p93, %p94
      %p96 = scmp.ne.s32.totalorder %s82, %s83
      %p97 = scmp.eq.s32.totalorder %s23, 2
      %p98 = por %p96, %p97
      %p100 = scmp.ne.s32.totalorder %s83, %s99
      %p101 = scmp.eq.s32.totalorder %s23, 0
      %p102 = por %p100, %p101
      %p103 = scmp.le.s32.totalorder 1, %s17
      %p104 = scmp.lt.s32.totalorder %s17, 4
      %p105 = pnand %p103, %p104
      %p106 = pneg %p105
      // Predicated region
      $region9: #{tpu_custom_call.1} parent=5 // pred_check
        _
      $region10: #{tpu_custom_call.1} parent=5 // pred_check_branch
        %108 = sbr.rel (%p105) target = $region12
      $region11: #{tpu_custom_call.1} parent=5 // pred_region
        %s109 = ssub.s32 %s17, 1
      $region12: #{tpu_custom_call.1} parent=5 // pred_fallthru
        _
      %p110 = scmp.lt.s32.totalorder %s17, 3
      // Predicated region
      $region13: #{tpu_custom_call.1} parent=5 // pred_check
        %p111 = pneg %p110
      $region14: #{tpu_custom_call.1} parent=5 // pred_check_branch
        %113 = sbr.rel (%p111) target = $region16
      $region15: #{tpu_custom_call.1} parent=5 // pred_region
        // Predicated region
        $region17: #{tpu_custom_call.1} parent=15 // pred_check
          %p114 = pneg %p37
        $region18: #{tpu_custom_call.1} parent=15 // pred_check_branch
          %116 = sbr.rel (%p114) target = $region20
        $region19: #{tpu_custom_call.1} parent=15 // pred_region
          %s117 = sand.u32 %s27, 1
          %s118 = scalar_lea.sflag [#allocation3], %s117
          %s119 = sand.u32 %s27, 1
          %s120 = smul.addr %s119, 16
          %s121 = scalar_lea.vmem [#allocation2], %s120
          %s123 = ssub.s32 256, 256
          %124 = vsyncadd %s118, %s123
          %s125 = smul.addr %s17, 64
          %s126 = scalar_lea.hbm %s0, %s125
          %s127 = sshll.u32 %s121, 4
          %s128 = int_to_ptr.vmem [resolvable:$true] %s127
          %133 = dma.hbm_to_vmem [thread:$0]  %s126, 256, %s128, %s118, 192, 64, 4
        $region20: #{tpu_custom_call.1} parent=15 // pred_fallthru
          _
        // Predicated region
        $region21: #{tpu_custom_call.1} parent=15 // pred_check
          %p134 = pneg %p63
        $region22: #{tpu_custom_call.1} parent=15 // pred_check_branch
          %136 = sbr.rel (%p134) target = $region24
        $region23: #{tpu_custom_call.1} parent=15 // pred_region
          %s137 = sand.u32 %s53, 1
          %s138 = scalar_lea.sflag [#allocation6], %s137
          %s139 = sand.u32 %s53, 1
          %s140 = smul.addr %s139, 4
          %s141 = scalar_lea.vmem [#allocation5], %s140
          %s143 = ssub.s32 64, 64
          %144 = vsyncadd %s138, %s143
          %s145 = smul.addr %s17, 64
          %s146 = scalar_lea.hbm %s1, %s145
          %s148 = sshll.u32 %s141, 4
          %s149 = int_to_ptr.vmem [resolvable:$true] %s148
          %151 = dma.hbm_to_vmem [thread:$0]  %s146, 64, %s149, %s138
        $region24: #{tpu_custom_call.1} parent=15 // pred_fallthru
          _
      $region16: #{tpu_custom_call.1} parent=5 // pred_fallthru
        _
      %p152 = scmp.le.s32.totalorder 1, %s17
      %p153 = scmp.lt.s32.totalorder %s17, 4
      %p154 = pnand %p152, %p153
      %p155 = pneg %p154
      // Predicated region
      $region25: #{tpu_custom_call.1} parent=5 // pred_check
        _
      $region26: #{tpu_custom_call.1} parent=5 // pred_check_branch
        %157 = sbr.rel (%p154) target = $region28
      $region27: #{tpu_custom_call.1} parent=5 // pred_region
        %s158 = ssub.s32 %s17, 1
        %s159 = sand.u32 %s30, 1
        %s160 = scalar_lea.sflag [#allocation3], %s159
        %s161 = sand.u32 %s30, 1
        %s162 = smul.addr %s161, 16
        %s163 = scalar_lea.vmem [#allocation2], %s162
        // Predicated region
        $region29: #{tpu_custom_call.1} parent=27 // pred_check
          %p164 = pneg %p43
        $region30: #{tpu_custom_call.1} parent=27 // pred_check_branch
          %166 = sbr.rel (%p164) target = $region32
        $region31: #{tpu_custom_call.1} parent=27 // pred_region
          %167 = dma.done %s160, 256
        $region32: #{tpu_custom_call.1} parent=27 // pred_fallthru
          _
        %s168 = sand.u32 %s56, 1
        %s169 = scalar_lea.sflag [#allocation6], %s168
        %s170 = sand.u32 %s56, 1
        %s171 = smul.addr %s170, 4
        %s172 = scalar_lea.vmem [#allocation5], %s171
        // Predicated region
        $region33: #{tpu_custom_call.1} parent=27 // pred_check
          %p173 = pneg %p69
        $region34: #{tpu_custom_call.1} parent=27 // pred_check_branch
          %175 = sbr.rel (%p173) target = $region36
        $region35: #{tpu_custom_call.1} parent=27 // pred_region
          %176 = dma.done %s169, 64
        $region36: #{tpu_custom_call.1} parent=27 // pred_fallthru
          _
        %s177 = sand.u32 %s30, 1
        %s178 = scalar_lea.sflag [#allocation3], %s177
        %s179 = sand.u32 %s30, 1
        %s180 = smul.addr %s179, 16
        %s181 = scalar_lea.vmem [#allocation2], %s180
        %p182 = pneg %p43
        %p183 = pneg %p40
        %s184 = sand.u32 %s56, 1
        %s185 = scalar_lea.sflag [#allocation6], %s184
        %s186 = sand.u32 %s56, 1
        %s187 = smul.addr %s186, 4
        %s188 = scalar_lea.vmem [#allocation5], %s187
        %p189 = pneg %p69
        %p190 = pneg %p66
        %p191 = pneg %p95
        %p192 = pneg %p92
        %s193 = sand.u32 %s82, 1
        %s194 = scalar_lea.sflag [#allocation4], %s193
        %s195 = sand.u32 %s82, 1
        %s196 = smul.addr %s195, 8
        %s197 = scalar_lea.vmem [#allocation7], %s196
        %v198 = vld [vmem:[%s163] sm:$0xf]
        %v199 = vld [vmem:[%s163 + $0x4] sm:$0xf]
        %v200 = vld [vmem:[%s163 + $0x8] sm:$0xf]
        %v201 = vld [vmem:[%s163 + $0xc] sm:$0xf]
        %v202 = vld [vmem:[%s172] sm:$0xf]
        %s203 = smul.u32 %s22, 128
        %v204 = vlaneseq
        %v205 = vand.u32 %v204, 127
        %v206 = vstv %s203
        %v207 = vadd.s32 %v206, %v205
        %vm208 = vcmp.lt.s32.totalorder %v207, 320
        %vm209 = vcmp.eq.s32.totalorder %v202, 255
        %v210 = vsel %vm209, 0, %v202
        %v211 = vlaneseq
        %v212 = vshrl.u32 %v211, 7
        %v214 = vunpack.c.l.s4 1966171168
        %v215 = vunpack.c.0.s8 %v214
        %v216 = vlaneseq
        %v217 = vshrl.u32 %v216, 7
        %v218 = vsub.s32 %v215, %v217
        %v219 = vrot.slane %v210, %v218
        %v220 = vcombine.high %v219, %v219
        %v222 = vunpack.c.l.s4 1966171168
        %v223 = vunpack.c.0.s8 %v222
        %v224 = vlaneseq
        %v225 = vshrl.u32 %v224, 7
        %v226 = vsub.s32 %v223, %v225
        %v227 = vrot.slane %v219, %v226
        %v229 = vunpack.c.l.s4 1966171168
        %v230 = vunpack.c.0.s8 %v229
        %v231 = vlaneseq
        %v232 = vshrl.u32 %v231, 7
        %v233 = vsub.s32 %v230, %v232
        %v234 = vrot.slane %v220, %v233
        %v235 = vcombine.high %v227, %v227
        %v236 = vcombine.high %v234, %v234
        %v237 = vlaneseq
        %v238 = vshrl.u32 %v237, 7
        %v239 = vsub.s32 0, %v238
        %v240 = vrot.slane %v227, %v239
        %v241 = vlaneseq
        %v242 = vshrl.u32 %v241, 7
        %v243 = vsub.s32 0, %v242
        %v244 = vrot.slane %v234, %v243
        %v245 = vlaneseq
        %v246 = vshrl.u32 %v245, 7
        %v247 = vsub.s32 0, %v246
        %v248 = vrot.slane %v235, %v247
        %v249 = vlaneseq
        %v250 = vshrl.u32 %v249, 7
        %v251 = vsub.s32 0, %v250
        %v252 = vrot.slane %v236, %v251
        %vm253 = vcmp.eq.s32.totalorder %v212, %v240
        %vm254 = vcmp.eq.s32.totalorder %v212, %v244
        %vm255 = vcmp.eq.s32.totalorder %v212, %v248
        %vm256 = vcmp.eq.s32.totalorder %v212, %v252
        %v257 = vsel %vm253, %v198, 0.0
        %v258 = vsel %vm254, %v199, 0.0
        %v259 = vsel %vm255, %v200, 0.0
        %v260 = vsel %vm256, %v201, 0.0
        %vm261 = vcmask 1043456
        %v262 = vsel %vm261, %v257, 0.0
        %v263 = vrot.slane %v262, 4
        %v264 = vadd.f32 %v262, %v263
        %v265 = vrot.slane %v264, 2
        %v266 = vadd.f32 %v264, %v265
        %v267 = vrot.slane %v266, 1
        %v268 = vadd.f32 %v266, %v267
        %v269 = vsel %vm261, %v258, 0.0
        %v270 = vrot.slane %v269, 4
        %v271 = vadd.f32 %v269, %v270
        %v272 = vrot.slane %v271, 2
        %v273 = vadd.f32 %v271, %v272
        %v274 = vrot.slane %v273, 1
        %v275 = vadd.f32 %v273, %v274
        %v276 = vsel %vm261, %v259, 0.0
        %v277 = vrot.slane %v276, 4
        %v278 = vadd.f32 %v276, %v277
        %v279 = vrot.slane %v278, 2
        %v280 = vadd.f32 %v278, %v279
        %v281 = vrot.slane %v280, 1
        %v282 = vadd.f32 %v280, %v281
        %v283 = vsel %vm261, %v260, 0.0
        %v284 = vrot.slane %v283, 4
        %v285 = vadd.f32 %v283, %v284
        %v286 = vrot.slane %v285, 2
        %v287 = vadd.f32 %v285, %v286
        %v288 = vrot.slane %v287, 1
        %v289 = vadd.f32 %v287, %v288
        %v290 = vsel %vm261, %v198, -inf
        %v291 = vrot.slane %v290, 4
        %v292 = vmax.f32 %v290, %v291
        %v293 = vrot.slane %v292, 2
        %v294 = vmax.f32 %v292, %v293
        %v295 = vrot.slane %v294, 1
        %v296 = vmax.f32 %v294, %v295
        %v297 = vsel %vm261, %v199, -inf
        %v298 = vrot.slane %v297, 4
        %v299 = vmax.f32 %v297, %v298
        %v300 = vrot.slane %v299, 2
        %v301 = vmax.f32 %v299, %v300
        %v302 = vrot.slane %v301, 1
        %v303 = vmax.f32 %v301, %v302
        %v304 = vsel %vm261, %v200, -inf
        %v305 = vrot.slane %v304, 4
        %v306 = vmax.f32 %v304, %v305
        %v307 = vrot.slane %v306, 2
        %v308 = vmax.f32 %v306, %v307
        %v309 = vrot.slane %v308, 1
        %v310 = vmax.f32 %v308, %v309
        %v311 = vsel %vm261, %v201, -inf
        %v312 = vrot.slane %v311, 4
        %v313 = vmax.f32 %v311, %v312
        %v314 = vrot.slane %v313, 2
        %v315 = vmax.f32 %v313, %v314
        %v316 = vrot.slane %v315, 1
        %v317 = vmax.f32 %v315, %v316
        %v318 = vsub.f32 %v198, %v296
        %v319 = vsub.f32 %v199, %v303
        %v320 = vsub.f32 %v200, %v310
        %v321 = vsub.f32 %v201, %v317
        %v322 = vmul.f32 %v318, 1.442695
        %v323 = vpow.pop %v322
        %v324 = vmul.f32 %v319, 1.442695
        %v325 = vpow.pop %v324
        %v326 = vmul.f32 %v320, 1.442695
        %v327 = vpow.pop %v326
        %v328 = vmul.f32 %v321, 1.442695
        %v329 = vpow.pop %v328
        %v330 = vsel %vm261, %v323, 0.0
        %v331 = vrot.slane %v330, 4
        %v332 = vadd.f32 %v330, %v331
        %v333 = vrot.slane %v332, 2
        %v334 = vadd.f32 %v332, %v333
        %v335 = vrot.slane %v334, 1
        %v336 = vadd.f32 %v334, %v335
        %v337 = vsel %vm261, %v325, 0.0
        %v338 = vrot.slane %v337, 4
        %v339 = vadd.f32 %v337, %v338
        %v340 = vrot.slane %v339, 2
        %v341 = vadd.f32 %v339, %v340
        %v342 = vrot.slane %v341, 1
        %v343 = vadd.f32 %v341, %v342
        %v344 = vsel %vm261, %v327, 0.0
        %v345 = vrot.slane %v344, 4
        %v346 = vadd.f32 %v344, %v345
        %v347 = vrot.slane %v346, 2
        %v348 = vadd.f32 %v346, %v347
        %v349 = vrot.slane %v348, 1
        %v350 = vadd.f32 %v348, %v349
        %v351 = vsel %vm261, %v329, 0.0
        %v352 = vrot.slane %v351, 4
        %v353 = vadd.f32 %v351, %v352
        %v354 = vrot.slane %v353, 2
        %v355 = vadd.f32 %v353, %v354
        %v356 = vrot.slane %v355, 1
        %v357 = vadd.f32 %v355, %v356
        %v358 = vlog2.pop %v336
        %v359 = vmul.f32 %v358, 0.6931472
        %v360 = vlog2.pop %v343
        %v361 = vmul.f32 %v360, 0.6931472
        %v362 = vlog2.pop %v350
        %v363 = vmul.f32 %v362, 0.6931472
        %v364 = vlog2.pop %v357
        %v365 = vmul.f32 %v364, 0.6931472
        %v366 = vadd.f32 %v296, %v359
        %v367 = vadd.f32 %v303, %v361
        %v368 = vadd.f32 %v310, %v363
        %v369 = vadd.f32 %v317, %v365
        %v370 = vsub.f32 %v366, %v268
        %v371 = vsub.f32 %v367, %v275
        %v372 = vsub.f32 %v368, %v282
        %v373 = vsub.f32 %v369, %v289
        %v374 = vsel %vm208, 1, 0
        %vm375 = vcmp.eq.s32.totalorder %v374, 1
        %vm380 = vcmask 1041409
        %v381 = vsel %vm380, %v371, %v370
        %vm382 = vcmask 1042434
        %v383 = vsel %vm382, %v372, %v381
        %vm384 = vcmask 1043459
        %v385 = vsel %vm384, %v373, %v383
        %v387 = vsel %vm375, %v385, 0.0
        %vm388 = vcmp.ne.s32.totalorder %v202, 255
        %vm389 = vmand %vm388, %vm375
        %v390 = vsel %vm389, 1, 0
        %v391 = vcvt.s32.f32 %v390
        %v392 = vsel %vm261, %v391, 0.0
        %v393 = vrot.slane %v392, 4
        %v394 = vadd.f32 %v392, %v393
        %v395 = vrot.slane %v394, 2
        %v396 = vadd.f32 %v394, %v395
        %v397 = vrot.slane %v396, 1
        %v398 = vadd.f32 %v396, %v397
        %v399 = vmul.f32 %v387, %v398
        %v400 = vsel %vm261, %v399, 0.0
        %401 = vadd.xlane.f32.xlu0 %v400
        %v402 = vpop.xlane.xlu0 %401
        %v403 = vrot.slane %v402, 4
        %v404 = vadd.f32 %v402, %v403
        %v405 = vrot.slane %v404, 2
        %v406 = vadd.f32 %v404, %v405
        %v407 = vrot.slane %v406, 1
        %v408 = vadd.f32 %v406, %v407
        %s409 = vtos %v408
        %vm410 = vcmp.eq.s32.totalorder %v212, 0
        %vm411 = vcmp.eq.s32.totalorder %v205, 0
        %vm412 = vmand %vm410, %vm411
        %v413 = vstv %s409
        %v414 = vsel %vm412, %v413, 0.0
        %415 = vst [vmem:[%s197] sm:$0xff] %v414
        %s416 = sand.u32 %s82, 1
        %s417 = scalar_lea.sflag [#allocation4], %s416
        %s418 = sand.u32 %s82, 1
        %s419 = smul.addr %s418, 8
        %s420 = scalar_lea.vmem [#allocation7], %s419
        // Predicated region
        $region37: #{tpu_custom_call.1} parent=27 // pred_check
          %p421 = pneg %p92
        $region38: #{tpu_custom_call.1} parent=27 // pred_check_branch
          %423 = sbr.rel (%p421) target = $region40
        $region39: #{tpu_custom_call.1} parent=27 // pred_region
          %s425 = ssub.s32 128, 128
          %426 = vsyncadd %s417, %s425
          %s427 = smul.addr %s22, 128
          %s428 = scalar_lea.hbm %s2, %s427
          %s430 = sshll.u32 %s420, 4
          %s431 = int_to_ptr.vmem [resolvable:$true] %s430
          %433 = dma.vmem_to_hbm [thread:$0]  %s431, 128, %s428, %s417
        $region40: #{tpu_custom_call.1} parent=27 // pred_fallthru
          _
      $region28: #{tpu_custom_call.1} parent=5 // pred_fallthru
        _
      %p434 = scmp.le.s32.totalorder 2, %s17
      // Predicated region
      $region41: #{tpu_custom_call.1} parent=5 // pred_check
        %p435 = pneg %p434
      $region42: #{tpu_custom_call.1} parent=5 // pred_check_branch
        %437 = sbr.rel (%p435) target = $region44
      $region43: #{tpu_custom_call.1} parent=5 // pred_region
        %s438 = ssub.s32 %s17, 2
        // Predicated region
        $region45: #{tpu_custom_call.1} parent=43 // pred_check
          %p439 = pneg %p98
        $region46: #{tpu_custom_call.1} parent=43 // pred_check_branch
          %441 = sbr.rel (%p439) target = $region48
        $region47: #{tpu_custom_call.1} parent=43 // pred_region
          %s442 = sand.u32 %s83, 1
          %s443 = scalar_lea.sflag [#allocation4], %s442
          %s444 = sand.u32 %s83, 1
          %s445 = smul.addr %s444, 8
          %s446 = scalar_lea.vmem [#allocation7], %s445
          %447 = dma.done %s443, 128
        $region48: #{tpu_custom_call.1} parent=43 // pred_fallthru
          _
      $region44: #{tpu_custom_call.1} parent=5 // pred_fallthru
        _
    $region6: #{tpu_custom_call.1} parent=1 // loop_footer
      %s21 = sadd.s32 1, %s17
    $region7: #{tpu_custom_call.1} parent=1 // loop_footer_branch
      %16 = sbr.rel target = $region3
    $region8: #{tpu_custom_call.1} parent=1 // loop_exit
      _
    %448 = vsyncpa [#allocation3], 1
    %s449 = scalar_lea.sflag [#allocation3], 1
    %450 = vsyncpa %s449, 1
    %451 = vsyncpa [#allocation6], 1
    %s452 = scalar_lea.sflag [#allocation6], 1
    %453 = vsyncpa %s452, 1
    %454 = vsyncpa [#allocation4], 1
    %s455 = scalar_lea.sflag [#allocation4], 1
    %456 = vsyncpa %s455, 1

</llo_original>
